<compile_context>
chip_gen: v7x
topology: tpu7x:2x2x1
jax: 0.10.0
libtpu: 0.0.40
codegen_flags: <defaults>
</compile_context>

<pallas_src>
import functools

import jax
import jax.numpy as jnp
from jax.experimental import pallas as pl
from jax.experimental.pallas import tpu as pltpu

HIDDEN = 128    # fc1 output width (one MXU pass wide)
SUBLANE = 8


def _round_up(x, m):
    return (x + m - 1) // m * m


def _stream_budget_bytes():
    # Tier the double-buffered streaming budget by VMEM capacity
    # (v5e/v6e: 128 MiB -> 48 MiB budget; v7x: 64 MiB -> 24 MiB budget).
    try:
        vmem = pltpu.get_tpu_info().vmem_capacity_bytes
    except Exception:
        vmem = 64 << 20
    return (48 << 20) if vmem >= (128 << 20) else (24 << 20)


def _mlp_kernel(x_ref, w1_ref, b1_ref, w2_ref, b2_ref, o_ref, *, compute_dtype):
    # One batch tile: fc1 (MXU) -> bias + ReLU (f32, VPU) -> fc2 (MXU) -> bias.
    x, w1, w2 = x_ref[...], w1_ref[...], w2_ref[...]
    if compute_dtype is not None:
        # In-kernel cast: VPU slot has slack; avoids an extra wrapper HBM pass.
        x = x.astype(compute_dtype)
        w1 = w1.astype(compute_dtype)
        w2 = w2.astype(compute_dtype)
    h = jnp.dot(x, w1, preferred_element_type=jnp.float32)
    h = jnp.maximum(h + b1_ref[...], 0.0)            # bias/ReLU in f32 (v5e VPU has no bf16)
    out = jnp.dot(h.astype(w2.dtype), w2, preferred_element_type=jnp.float32)
    o_ref[...] = (out + b2_ref[...]).astype(o_ref.dtype)


def class_incremental_forward(x, w1, b1, w2, b2, *, compute_dtype=None,
                              max_tile_rows=8192):
    """x: [B, K], w1: [K, 128], b1: [128] or [1,128], w2: [128, N],
    b2: [N] or [1,N]  ->  [B, N]  (== fc2(relu(fc1(x))))."""
    B, K = x.shape
    H = w1.shape[1]
    N = w2.shape[1]
    out_dtype = x.dtype

    # Biases as [1, H]/[1, N] f32 rows (tiny; broadcast on the VPU in-kernel).
    b1r = jnp.reshape(b1, (1, H)).astype(jnp.float32)
    b2r = jnp.reshape(b2, (1, N)).astype(jnp.float32)

    x_sz = jnp.dtype(x.dtype).itemsize
    o_sz = jnp.dtype(out_dtype).itemsize
    w_sz = jnp.dtype(w1.dtype).itemsize

    # ---- batch tile: largest 8-granular tile within the streaming budget,
    #      capped so the grid has >=2 steps (v7x megacore) when B is large. ----
    per_row = 2 * (K * x_sz + N * o_sz)               # double-buffered x + out tiles
    tm = min(max_tile_rows, _stream_budget_bytes() // max(per_row, 1))
    tm = max(SUBLANE, (tm // SUBLANE) * SUBLANE)
    if B <= SUBLANE:
        TM = B                                        # full-dim block (rule-exempt)
    else:
        cap = _round_up(pl.cdiv(B, 2), SUBLANE)       # >=2 grid steps when it matters
        TM = max(SUBLANE, min(tm, cap))
    grid = (pl.cdiv(B, TM),)                          # partial last tile is masked

    # ---- VMEM: actual need + headroom (no large floor, no near-64MiB clamp). ----
    weight_bytes = (K * H + H * N) * w_sz + (H + N) * 4
    vmem_bytes = (2 * TM * K * x_sz                   # double-buffered x tiles
                  + 2 * TM * N * o_sz                 # double-buffered out tiles
                  + 2 * weight_bytes)                 # resident weights (2 bufs default)
    vmem_limit = int(min(max(vmem_bytes + (2 << 20), 8 << 20), 100 << 20))

    # ---- cost estimate: unpadded traffic. ----
    cost = pl.CostEstimate(
        flops=2 * B * (K * H + H * N),
        transcendentals=0,
        bytes_accessed=int(B * K * x_sz + weight_bytes + B * N * o_sz),
    )

    kernel = functools.partial(_mlp_kernel, compute_dtype=compute_dtype)
    return pl.pallas_call(
        kernel,
        out_shape=jax.ShapeDtypeStruct((B, N), out_dtype),
        grid=grid,
        in_specs=[
            pl.BlockSpec((TM, K), lambda i: (i, 0)),   # x: streamed, no pad/copy
            pl.BlockSpec((K, H), lambda i: (0, 0)),    # w1: VMEM-resident
            pl.BlockSpec((1, H), lambda i: (0, 0)),    # b1: VMEM-resident
            pl.BlockSpec((H, N), lambda i: (0, 0)),    # w2: VMEM-resident
            pl.BlockSpec((1, N), lambda i: (0, 0)),    # b2: VMEM-resident
        ],
        out_specs=pl.BlockSpec((TM, N), lambda i: (i, 0)),   # compact [B, N] output
        compiler_params=pltpu.CompilerParams(
            dimension_semantics=("parallel",),
            vmem_limit_bytes=vmem_limit,
        ),
        cost_estimate=cost,
    )(x, w1, b1r, w2, b2r)


def init_params(key, input_size, num_classes, hidden=HIDDEN, dtype=jnp.float32):
    # PyTorch-Linear-style uniform init (bound = 1/sqrt(fan_in)).
    k1, k2, k3, k4 = jax.random.split(key, 4)
    bound1 = 1.0 / jnp.sqrt(input_size)
    bound2 = 1.0 / jnp.sqrt(hidden)
    w1 = jax.random.uniform(k1, (input_size, hidden), dtype, -bound1, bound1)
    b1 = jax.random.uniform(k2, (hidden,), dtype, -bound1, bound1)
    w2 = jax.random.uniform(k3, (hidden, num_classes), dtype, -bound2, bound2)
    b2 = jax.random.uniform(k4, (num_classes,), dtype, -bound2, bound2)
    return w1, b1, w2, b2


if __name__ == "__main__":
    key = jax.random.PRNGKey(0)
    kx, kx2, kp = jax.random.split(key, 3)

    input_size, num_classes = 32, 10
    w1, b1, w2, b2 = init_params(kp, input_size, num_classes)

    def ref_fn(v):  # plain-JAX reference, same math as the PyTorch module
        return jnp.maximum(v @ w1 + b1, 0.0) @ w2 + b2

    # Small batch (single tile).
    x = jax.random.normal(kx, (8, input_size), jnp.float32)
    out = jax.block_until_ready(class_incremental_forward(x, w1, b1, w2, b2))
    assert out.shape == (8, num_classes)
    assert jnp.allclose(out, ref_fn(x), atol=2e-2, rtol=2e-2)

    # Multi-tile grid with a partial last tile (exercises masked OOB-row stores).
    x2 = jax.random.normal(kx2, (300, input_size), jnp.float32)
    out2 = jax.block_until_ready(class_incremental_forward(x2, w1, b1, w2, b2))
    assert out2.shape == (300, num_classes)
    assert jnp.allclose(out2, ref_fn(x2), atol=2e-2, rtol=2e-2)

    # bf16-operand MXU path (in-kernel cast, f32 accumulation) -> loose tolerance.
    out_bf16 = jax.block_until_ready(
        class_incremental_forward(x, w1, b1, w2, b2, compute_dtype=jnp.bfloat16))
    assert out_bf16.shape == (8, num_classes)
    assert jnp.allclose(out_bf16, ref_fn(x), atol=1e-1, rtol=1e-1)

    print("KERNEL_OK")
</pallas_src>

<mosaic_0001>
module attributes {stable_mosaic.version = 11 : i64} {
  func.func @_mlp_kernel(%arg0: i32, %arg1: memref<8x32xf32, #tpu.memory_space<vmem>>, %arg2: memref<32x128xf32, #tpu.memory_space<vmem>>, %arg3: memref<1x128xf32, #tpu.memory_space<vmem>>, %arg4: memref<128x10xf32, #tpu.memory_space<vmem>>, %arg5: memref<1x10xf32, #tpu.memory_space<vmem>>, %arg6: memref<8x10xf32, #tpu.memory_space<vmem>>) attributes {dimension_semantics = [#tpu.dimension_semantics<parallel>], iteration_bounds = array<i64: 1>, scalar_prefetch = 0 : i64, scratch_operands = 0 : i64, tpu.core_type = #tpu.core_type<tc>, window_params = [{transform_indices = @transform_0, window_bounds = array<i64: 8, 32>}, {pipeline_mode = #tpu.pipeline_mode<synchronous>, transform_indices = @transform_1, window_bounds = array<i64: 32, 128>}, {pipeline_mode = #tpu.pipeline_mode<synchronous>, transform_indices = @transform_2, window_bounds = array<i64: 1, 128>}, {pipeline_mode = #tpu.pipeline_mode<synchronous>, transform_indices = @transform_3, window_bounds = array<i64: 128, 10>}, {pipeline_mode = #tpu.pipeline_mode<synchronous>, transform_indices = @transform_4, window_bounds = array<i64: 1, 10>}, {transform_indices = @transform_5, window_bounds = array<i64: 8, 10>}]} {
    %c0 = arith.constant 0 : index
    %c0_0 = arith.constant 0 : index
    %0 = vector.load %arg1[%c0, %c0_0] : memref<8x32xf32, #tpu.memory_space<vmem>>, vector<8x32xf32>
    %c0_1 = arith.constant 0 : index
    %c0_2 = arith.constant 0 : index
    %1 = vector.load %arg2[%c0_1, %c0_2] : memref<32x128xf32, #tpu.memory_space<vmem>>, vector<32x128xf32>
    %c0_3 = arith.constant 0 : index
    %c0_4 = arith.constant 0 : index
    %2 = vector.load %arg4[%c0_3, %c0_4] : memref<128x10xf32, #tpu.memory_space<vmem>>, vector<128x10xf32>
    %cst = arith.constant dense<0.000000e+00> : vector<8x128xf32>
    %3 = tpu.matmul %0, %1, %cst {dimension_numbers = #tpu.dot_dimension_numbers<[1], [0], [0], [1], [0, 0, 1, 1], [], []>} : vector<8x32xf32>, vector<32x128xf32>, vector<8x128xf32> -> vector<8x128xf32>
    %c0_5 = arith.constant 0 : index
    %c0_6 = arith.constant 0 : index
    %4 = vector.load %arg3[%c0_5, %c0_6] : memref<1x128xf32, #tpu.memory_space<vmem>>, vector<1x128xf32>
    %5 = vector.broadcast %4 : vector<1x128xf32> to vector<8x128xf32>
    %6 = arith.addf %3, %5 : vector<8x128xf32>
    %cst_7 = arith.constant 0.000000e+00 : f32
    %7 = vector.broadcast %cst_7 : f32 to vector<8x128xf32>
    %8 = arith.maximumf %6, %7 : vector<8x128xf32>
    %cst_8 = arith.constant dense<0.000000e+00> : vector<8x10xf32>
    %9 = tpu.matmul %8, %2, %cst_8 {dimension_numbers = #tpu.dot_dimension_numbers<[1], [0], [0], [1], [0, 0, 1, 1], [], []>} : vector<8x128xf32>, vector<128x10xf32>, vector<8x10xf32> -> vector<8x10xf32>
    %c0_9 = arith.constant 0 : index
    %c0_10 = arith.constant 0 : index
    %10 = vector.load %arg5[%c0_9, %c0_10] : memref<1x10xf32, #tpu.memory_space<vmem>>, vector<1x10xf32>
    %11 = vector.broadcast %10 : vector<1x10xf32> to vector<8x10xf32>
    %12 = arith.addf %9, %11 : vector<8x10xf32>
    %c0_11 = arith.constant 0 : index
    %c0_12 = arith.constant 0 : index
    %13 = vector.load %arg6[%c0_11, %c0_12] : memref<8x10xf32, #tpu.memory_space<vmem>>, vector<8x10xf32>
    tpu.vector_store %arg6[%c0_11, %c0_12], %12 {strides = array<i32>} : memref<8x10xf32, #tpu.memory_space<vmem>>, vector<8x10xf32>,
    return
  }
  func.func @transform_0(%arg0: i32) -> (i32, i32) {
    %c0_i32 = arith.constant 0 : i32
    %c0_i32_0 = arith.constant 0 : i32
    return %arg0, %c0_i32 : i32, i32
  }
  func.func @transform_1(%arg0: i32) -> (i32, i32) {
    %c0_i32 = arith.constant 0 : i32
    %c0_i32_0 = arith.constant 0 : i32
    %c0_i32_1 = arith.constant 0 : i32
    return %c0_i32, %c0_i32_0 : i32, i32
  }
  func.func @transform_2(%arg0: i32) -> (i32, i32) {
    %c0_i32 = arith.constant 0 : i32
    %c0_i32_0 = arith.constant 0 : i32
    %c0_i32_1 = arith.constant 0 : i32
    return %c0_i32, %c0_i32_0 : i32, i32
  }
  func.func @transform_3(%arg0: i32) -> (i32, i32) {
    %c0_i32 = arith.constant 0 : i32
    %c0_i32_0 = arith.constant 0 : i32
    %c0_i32_1 = arith.constant 0 : i32
    return %c0_i32, %c0_i32_0 : i32, i32
  }
  func.func @transform_4(%arg0: i32) -> (i32, i32) {
    %c0_i32 = arith.constant 0 : i32
    %c0_i32_0 = arith.constant 0 : i32
    %c0_i32_1 = arith.constant 0 : i32
    return %c0_i32, %c0_i32_0 : i32, i32
  }
  func.func @transform_5(%arg0: i32) -> (i32, i32) {
    %c0_i32 = arith.constant 0 : i32
    %c0_i32_0 = arith.constant 0 : i32
    return %arg0, %c0_i32 : i32, i32
  }
}

</mosaic_0001>

<llo_original>
// kernel: tpu_custom_call.1
$region0: #{tpu_custom_call.1}
  #allocation0 [shape = 'u32[]', space=smem, size = 0x4, offset = 0x4, fixed_abs, tag = 'smem constant byte address 0x4 - core index']
  #allocation1 [shape = 'u32[144,128]{1,0:T(1,128)}', space=vmem, size = 0x12000, scoped, tag = 'internal scratch']
  %s0 = inlined_call_operand.vmem [shape: f32[8,32], index: 0, kind: input, shape index: {}]
  %s1 = inlined_call_operand.vmem [shape: f32[32,128], index: 1, kind: input, shape index: {}]
  %s2 = inlined_call_operand.vmem [shape: f32[1,128], index: 2, kind: input, shape index: {}]
  %s3 = inlined_call_operand.vmem [shape: f32[128,10], index: 3, kind: input, shape index: {}]
  %s4 = inlined_call_operand.vmem [shape: f32[1,10], index: 4, kind: input, shape index: {}]
  %s5 = inlined_call_operand.hbm [shape: f32[8,10], index: 5, kind: output, shape index: {}]
  %s6 = sld [smem:[#allocation0]]
  $region30: #{tpu_custom_call.1} parent=0
    _
  %s8 = ssub.s32 1, %s6
  %s9 = scalar_select 0, %s8, %s6
  $region1: #{tpu_custom_call.1} parent=0
    #allocation2 [shape = 'u8[4096]{0}', space=vmem, size = 0x1000, scoped, tag = 'output window, operand 0, single buffered']
    #allocation3 [shape = 's32[1]{0}', space=sflag, size = 0x4, scoped, tag = 'scoped memory for tpu_custom_call.1']
    %10 = vsyncpa [#allocation3], 0
    // Predicated region
    $region2: #{tpu_custom_call.1} parent=1 // pred_check
      _
    $region3: #{tpu_custom_call.1} parent=1 // pred_check_branch
      %12 = sbr.rel (0) target = $region5
    $region4: #{tpu_custom_call.1} parent=1 // pred_region
      _
    $region5: #{tpu_custom_call.1} parent=1 // pred_fallthru
      _
    // Predicated region
    $region6: #{tpu_custom_call.1} parent=1 // pred_check
      _
    $region7: #{tpu_custom_call.1} parent=1 // pred_check_branch
      %14 = sbr.rel (0) target = $region9
    $region8: #{tpu_custom_call.1} parent=1 // pred_region
      _
    $region9: #{tpu_custom_call.1} parent=1 // pred_fallthru
      _
    // Predicated region
    $region10: #{tpu_custom_call.1} parent=1 // pred_check
      _
    $region11: #{tpu_custom_call.1} parent=1 // pred_check_branch
      %16 = sbr.rel (0) target = $region13
    $region12: #{tpu_custom_call.1} parent=1 // pred_region
      _
    $region13: #{tpu_custom_call.1} parent=1 // pred_fallthru
      _
    // Predicated region
    $region14: #{tpu_custom_call.1} parent=1 // pred_check
      _
    $region15: #{tpu_custom_call.1} parent=1 // pred_check_branch
      %18 = sbr.rel (0) target = $region17
    $region16: #{tpu_custom_call.1} parent=1 // pred_region
      _
    $region17: #{tpu_custom_call.1} parent=1 // pred_fallthru
      _
    // Predicated region
    $region18: #{tpu_custom_call.1} parent=1 // pred_check
      _
    $region19: #{tpu_custom_call.1} parent=1 // pred_check_branch
      %20 = sbr.rel (0) target = $region21
    $region20: #{tpu_custom_call.1} parent=1 // pred_region
      _
    $region21: #{tpu_custom_call.1} parent=1 // pred_fallthru
      _
    %v21 = vld [vmem:[%s0] sm:$0xff]
    %v22 = vld [vmem:[%s1] sm:$0xff]
    %v23 = vld [vmem:[%s1 + $0x8] sm:$0xff]
    %v24 = vld [vmem:[%s1 + $0x10] sm:$0xff]
    %v25 = vld [vmem:[%s1 + $0x18] sm:$0xff]
    %v26 = vld [vmem:[%s3] sm:$0xff]
    %v27 = vld [vmem:[%s3 + $0x8] sm:$0xff]
    %v28 = vld [vmem:[%s3 + $0x10] sm:$0xff]
    %v29 = vld [vmem:[%s3 + $0x18] sm:$0xff]
    %v30 = vld [vmem:[%s3 + $0x20] sm:$0xff]
    %v31 = vld [vmem:[%s3 + $0x28] sm:$0xff]
    %v32 = vld [vmem:[%s3 + $0x30] sm:$0xff]
    %v33 = vld [vmem:[%s3 + $0x38] sm:$0xff]
    %v34 = vld [vmem:[%s3 + $0x40] sm:$0xff]
    %v35 = vld [vmem:[%s3 + $0x48] sm:$0xff]
    %v36 = vld [vmem:[%s3 + $0x50] sm:$0xff]
    %v37 = vld [vmem:[%s3 + $0x58] sm:$0xff]
    %v38 = vld [vmem:[%s3 + $0x60] sm:$0xff]
    %v39 = vld [vmem:[%s3 + $0x68] sm:$0xff]
    %v40 = vld [vmem:[%s3 + $0x70] sm:$0xff]
    %v41 = vld [vmem:[%s3 + $0x78] sm:$0xff]
    %v42 = vld [vmem:[%s2] sm:$0x1]
    %v44 = vlaneseq
    %v45 = vshrl.u32 %v44, 7
    %v46 = vsub.s32 0, %v45
    %v47 = vrot.slane %v42, %v46
    %vm49 = vcmask 261120
    %v51 = vsel %vm49, %v21, 0
    %53 = vmatprep.subr.mxu0 0.0
    %54 = vmatpush1.msra.mxu0 %v22
    %55 = vmatprep.subr.mxu0 0.0
    %56 = vmatpush1.msra.mxu0 %v23
    %57 = vmatprep.subr.mxu0 0.0
    %58 = vmatpush1.msra.mxu0 %v24
    %59 = vmatprep.subr.mxu0 0.0
    %60 = vmatpush1.msra.mxu0 %v25
    %61 = vmatprep.subr.mxu0 0.0
    %62 = vmatpush1.msra.mxu0 0.0
    %63 = vmatprep.subr.mxu0 0.0
    %64 = vmatpush1.msra.mxu0 0.0
    %65 = vmatprep.subr.mxu0 0.0
    %66 = vmatpush1.msra.mxu0 0.0
    %67 = vmatprep.subr.mxu0 0.0
    %68 = vmatpush1.msra.mxu0 0.0
    %69 = vmatprep.subr.mxu0 0.0
    %70 = vmatpush1.msra.mxu0 0.0
    %71 = vmatprep.subr.mxu0 0.0
    %72 = vmatpush1.msra.mxu0 0.0
    %73 = vmatprep.subr.mxu0 0.0
    %74 = vmatpush1.msra.mxu0 0.0
    %75 = vmatprep.subr.mxu0 0.0
    %76 = vmatpush1.msra.mxu0 0.0
    %77 = vmatprep.subr.mxu0 0.0
    %78 = vmatpush1.msra.mxu0 0.0
    %79 = vmatprep.subr.mxu0 0.0
    %80 = vmatpush1.msra.mxu0 0.0
    %81 = vmatprep.subr.mxu0 0.0
    %82 = vmatpush1.msra.mxu0 0.0
    %83 = vmatprep.subr.mxu0 0.0
    %84 = vmatpush1.msra.mxu0 0.0
    %85 = vmatprep.subr.mxu0 0.0
    %86 = vmatpush1.msra.mxu0 0.0
    %87 = vmatprep.subr.mxu0 0.0
    %88 = vmatpush1.msra.mxu0 0.0
    %89 = vmatprep.subr.mxu0 0.0
    %90 = vmatpush1.msra.mxu0 0.0
    %91 = vmatprep.subr.mxu0 0.0
    %92 = vmatpush1.msra.mxu0 0.0
    %93 = vmatprep.subr.mxu0 0.0
    %94 = vmatpush1.msra.mxu0 0.0
    %95 = vmatprep.subr.mxu0 0.0
    %96 = vmatpush1.msra.mxu0 0.0
    %97 = vmatprep.subr.mxu0 0.0
    %98 = vmatpush1.msra.mxu0 0.0
    %99 = vmatprep.subr.mxu0 0.0
    %100 = vmatpush1.msra.mxu0 0.0
    %101 = vmatprep.subr.mxu0 0.0
    %102 = vmatpush1.msra.mxu0 0.0
    %103 = vmatprep.subr.mxu0 0.0
    %104 = vmatpush1.msra.mxu0 0.0
    %105 = vmatprep.subr.mxu0 0.0
    %106 = vmatpush1.msra.mxu0 0.0
    %107 = vmatprep.subr.mxu0 0.0
    %108 = vmatpush1.msra.mxu0 0.0
    %109 = vmatprep.subr.mxu0 0.0
    %110 = vmatpush1.msra.mxu0 0.0
    %111 = vmatprep.subr.mxu0 0.0
    %112 = vmatpush1.msra.mxu0 0.0
    %113 = vmatprep.subr.mxu0 0.0
    %114 = vmatpush1.msra.mxu0 0.0
    %115 = vmatprep.subr.mxu0 0.0
    %116 = vmatpush1.msra.mxu0 0.0
    %117 = vmatprep.mubr.f32.mxu0 0.0
    %118 = vmatmul.mubr.f32.gmra.mrb[0].mxu0 %v51
    %v119 = vpop.f32.mrb[0].mxu0
    %v120 = vadd.f32 %v47, %v119
    %v121 = vpop.f32.mrb[0].mxu0
    %122 = vdwg.mxu0
    %v123 = vmax.f32 %v120, 0.0
    %v124 = vld [vmem:[%s4] sm:$0x1]
    %v126 = vlaneseq
    %v127 = vshrl.u32 %v126, 7
    %v128 = vsub.s32 0, %v127
    %v129 = vrot.slane %v124, %v128
    %131 = vmatprep.subr.mxu0 0.0
    %132 = vmatpush1.msra.mxu0 %v26
    %133 = vmatprep.subr.mxu0 0.0
    %134 = vmatpush1.msra.mxu0 %v27
    %135 = vmatprep.subr.mxu0 0.0
    %136 = vmatpush1.msra.mxu0 %v28
    %137 = vmatprep.subr.mxu0 0.0
    %138 = vmatpush1.msra.mxu0 %v29
    %139 = vmatprep.subr.mxu0 0.0
    %140 = vmatpush1.msra.mxu0 %v30
    %141 = vmatprep.subr.mxu0 0.0
    %142 = vmatpush1.msra.mxu0 %v31
    %143 = vmatprep.subr.mxu0 0.0
    %144 = vmatpush1.msra.mxu0 %v32
    %145 = vmatprep.subr.mxu0 0.0
    %146 = vmatpush1.msra.mxu0 %v33
    %147 = vmatprep.subr.mxu0 0.0
    %148 = vmatpush1.msra.mxu0 %v34
    %149 = vmatprep.subr.mxu0 0.0
    %150 = vmatpush1.msra.mxu0 %v35
    %151 = vmatprep.subr.mxu0 0.0
    %152 = vmatpush1.msra.mxu0 %v36
    %153 = vmatprep.subr.mxu0 0.0
    %154 = vmatpush1.msra.mxu0 %v37
    %155 = vmatprep.subr.mxu0 0.0
    %156 = vmatpush1.msra.mxu0 %v38
    %157 = vmatprep.subr.mxu0 0.0
    %158 = vmatpush1.msra.mxu0 %v39
    %159 = vmatprep.subr.mxu0 0.0
    %160 = vmatpush1.msra.mxu0 %v40
    %161 = vmatprep.subr.mxu0 0.0
    %162 = vmatpush1.msra.mxu0 %v41
    %163 = vmatprep.subr.mxu0 0.0
    %164 = vmatpush1.msra.mxu0 0.0
    %165 = vmatprep.subr.mxu0 0.0
    %166 = vmatpush1.msra.mxu0 0.0
    %167 = vmatprep.subr.mxu0 0.0
    %168 = vmatpush1.msra.mxu0 0.0
    %169 = vmatprep.subr.mxu0 0.0
    %170 = vmatpush1.msra.mxu0 0.0
    %171 = vmatprep.subr.mxu0 0.0
    %172 = vmatpush1.msra.mxu0 0.0
    %173 = vmatprep.subr.mxu0 0.0
    %174 = vmatpush1.msra.mxu0 0.0
    %175 = vmatprep.subr.mxu0 0.0
    %176 = vmatpush1.msra.mxu0 0.0
    %177 = vmatprep.subr.mxu0 0.0
    %178 = vmatpush1.msra.mxu0 0.0
    %179 = vmatprep.subr.mxu0 0.0
    %180 = vmatpush1.msra.mxu0 0.0
    %181 = vmatprep.subr.mxu0 0.0
    %182 = vmatpush1.msra.mxu0 0.0
    %183 = vmatprep.subr.mxu0 0.0
    %184 = vmatpush1.msra.mxu0 0.0
    %185 = vmatprep.subr.mxu0 0.0
    %186 = vmatpush1.msra.mxu0 0.0
    %187 = vmatprep.subr.mxu0 0.0
    %188 = vmatpush1.msra.mxu0 0.0
    %189 = vmatprep.subr.mxu0 0.0
    %190 = vmatpush1.msra.mxu0 0.0
    %191 = vmatprep.subr.mxu0 0.0
    %192 = vmatpush1.msra.mxu0 0.0
    %193 = vmatprep.subr.mxu0 0.0
    %194 = vmatpush1.msra.mxu0 0.0
    %195 = vmatprep.mubr.f32.mxu0 0.0
    %196 = vmatmul.mubr.f32.gmra.mrb[0].mxu0 %v123
    %v197 = vpop.f32.mrb[0].mxu0
    %v198 = vadd.f32 %v129, %v197
    %v199 = vpop.f32.mrb[0].mxu0
    %200 = vdwg.mxu0
    %vm201 = vcmask 80896
    %202 = vst.msk [vmem:[#allocation2] sm:$0xff] %vm201, %v198
    // Predicated region
    $region22: #{tpu_custom_call.1} parent=1 // pred_check
      _
    $region23: #{tpu_custom_call.1} parent=1 // pred_check_branch
      %204 = sbr.rel (0) target = $region25
    $region24: #{tpu_custom_call.1} parent=1 // pred_region
      %s206 = ssub.s32 128, 128
      %207 = vsyncadd [#allocation3], %s206
      %s209 = sshll.u32 [#allocation2], 4
      %s210 = int_to_ptr.vmem [resolvable:$true] %s209
      %212 = dma.vmem_to_hbm [thread:$0]  %s210, 128, %s5, [#allocation3]
    $region25: #{tpu_custom_call.1} parent=1 // pred_fallthru
      _
    // Predicated region
    $region26: #{tpu_custom_call.1} parent=1 // pred_check
      _
    $region27: #{tpu_custom_call.1} parent=1 // pred_check_branch
      %214 = sbr.rel (0) target = $region29
    $region28: #{tpu_custom_call.1} parent=1 // pred_region
      %215 = dma.done [#allocation3], 128
    $region29: #{tpu_custom_call.1} parent=1 // pred_fallthru
      _
    %216 = vsyncpa [#allocation3], 1

</llo_original>
